<compile_context>
chip_gen: v6e
topology: v6e:2x2x1
jax: 0.10.0
libtpu: 0.0.40
codegen_flags: <defaults>
</compile_context>

<pallas_src>
import functools
import math

import jax
import jax.numpy as jnp
from jax import lax
from jax.experimental import pallas as pl
from jax.experimental.pallas import tpu as pltpu


def build_pe_table(d_model: int, max_len: int = 100) -> jnp.ndarray:
    """Deterministic sinusoidal PE table, matches the torch __init__ buffer."""
    position = jnp.arange(max_len, dtype=jnp.float32)[:, None]            # [L, 1]
    div_term = jnp.exp(
        jnp.arange(0, d_model, 2, dtype=jnp.float32)
        * (-jnp.log(jnp.float32(10000.0)) / d_model)
    )                                                                      # [D/2]
    pe = jnp.zeros((max_len, d_model), dtype=jnp.float32)
    pe = pe.at[:, 0::2].set(jnp.sin(position * div_term))
    pe = pe.at[:, 1::2].set(jnp.cos(position * div_term))
    return pe


def _sublane(dtype) -> int:
    return {4: 8, 2: 16, 1: 32}.get(jnp.dtype(dtype).itemsize, 8)


def _target_block_bytes() -> int:
    """Per-generation target size (bytes) for one x/out block."""
    try:
        kind = jax.devices()[0].device_kind.lower()
    except Exception:
        kind = ""
    if "v7" in kind:
        return 6 << 20   # 3.2 TB/s: amortize the ~0.35us/step fixed overhead
    if "v6" in kind or "trillium" in kind:
        return 4 << 20
    return 2 << 20       # v5e / unknown / interpreter: conservative


def _fold_factor(S: int, D: int) -> int:
    """Smallest S2 dividing S with (S2*D) % 128 == 0 (lane-dense columns).

    Returns 1 if D is already a multiple of 128 or no such divisor exists.
    """
    if D % 128 == 0:
        return 1
    need = 128 // math.gcd(D, 128)
    for s2 in range(need, S + 1, need):
        if S % s2 == 0:
            return s2
    return 1


def _choose_tiles(B, S1, C, itemsize, sublane, target_bytes):
    """Pick (rb, ts) with rb*ts*C*itemsize ~<= target_bytes, ts sublane-aligned."""
    row_bytes = C * itemsize
    if S1 <= sublane or S1 * row_bytes <= target_bytes:
        ts = S1                                        # full dim: always legal
    else:
        ts = max(sublane, (target_bytes // (sublane * row_bytes)) * sublane)
    rb = max(1, min(B, target_bytes // max(1, ts * row_bytes)))
    n_s = pl.cdiv(S1, ts)
    n_b = pl.cdiv(B, rb)

    # v7x: make sure there are >=2 independent blocks so both TensorCores work.
    total_bytes = B * S1 * C * itemsize
    if n_s * n_b == 1 and total_bytes >= (1 << 20):
        if B >= 2:
            rb = (B + 1) // 2
        elif S1 >= 2 * sublane:
            ts = max(sublane, ((S1 // 2) // sublane) * sublane)
        n_s = pl.cdiv(S1, ts)
        n_b = pl.cdiv(B, rb)
    return rb, ts, n_s, n_b


def _make_eval_kernel():
    def kernel(x_ref, pe_ref, o_ref):
        # (rb, ts, C) + (ts, C): pe broadcasts over the batch block.
        o_ref[...] = (x_ref[...] + pe_ref[...]).astype(o_ref.dtype)
    return kernel


def _make_train_kernel(dropout_p, S1, C, rb, ts):
    # Keep an element iff hash(seed, global_index) >= round(p * 2**32).
    thresh = min(int(round(float(dropout_p) * 4294967296.0)), 4294967295)
    scale = 1.0 / (1.0 - float(dropout_p))

    def kernel(seed_ref, x_ref, pe_ref, o_ref):
        y = x_ref[...] + pe_ref[...]
        si = pl.program_id(0)
        bi = pl.program_id(1)
        shp = y.shape
        # Global flat index of each element (identical to the flat index of the
        # original [B, S, D] tensor), so the mask is independent of the tiling.
        b_ids = (lax.broadcasted_iota(jnp.int32, shp, 0) + bi * rb).astype(jnp.uint32)
        s_ids = (lax.broadcasted_iota(jnp.int32, shp, 1) + si * ts).astype(jnp.uint32)
        c_ids = lax.broadcasted_iota(jnp.int32, shp, 2).astype(jnp.uint32)
        h = (b_ids * jnp.uint32(S1) + s_ids) * jnp.uint32(C) + c_ids
        h = h ^ seed_ref[0].astype(jnp.uint32)
        # murmur3 fmix32 finalizer: (seed, index) -> uniform 32-bit stream.
        h = h ^ (h >> 16)
        h = h * jnp.uint32(0x85EBCA6B)
        h = h ^ (h >> 13)
        h = h * jnp.uint32(0xC2B2AE35)
        h = h ^ (h >> 16)
        keep = h >= jnp.uint32(thresh)
        y = jnp.where(keep, y * jnp.asarray(scale, y.dtype),
                      jnp.asarray(0.0, y.dtype))
        o_ref[...] = y.astype(o_ref.dtype)

    return kernel


@functools.partial(jax.jit, static_argnames=("dropout_p", "training"))
def positional_encoding_forward(x, pe, seed=None, *, dropout_p=0.1, training=False):
    """x: [B, S, D]; pe: [max_len, D]; seed: int32[1] (training only) -> [B, S, D]."""
    B, S, D = x.shape
    itemsize = jnp.dtype(x.dtype).itemsize
    sublane = _sublane(x.dtype)

    # Lane-dense view: fold the minimal number of sequence positions into the
    # last axis so it is a multiple of 128 (contiguous reshape, free).
    S2 = _fold_factor(S, D)
    S1 = S // S2
    C = S2 * D

    x3 = x.reshape(B, S1, C)
    # TODO(synk): pe is pre-cast to x.dtype, so for bf16 inputs the add happens
    # in bf16 while torch promotes against the fp32 pe buffer (exact for fp32).
    pe2 = pe[:S, :].astype(x.dtype).reshape(S1, C)

    target = _target_block_bytes()
    rb, ts, n_s, n_b = _choose_tiles(B, S1, C, itemsize, sublane, target)

    # VMEM footprint: double-buffered x and out blocks plus the (sublane-padded)
    # pe block, also double-buffered.  The batch axis is innermost in the grid,
    # so the unchanged pe block is not re-fetched across batch blocks.
    x_blk = rb * ts * C * itemsize
    pe_rows = ((ts + sublane - 1) // sublane) * sublane
    pe_blk = pe_rows * C * itemsize
    footprint = 4 * x_blk + 2 * pe_blk
    vmem_limit = int(min(max(footprint + (8 << 20), 16 << 20), 48 << 20))

    compiler_params = pltpu.CompilerParams(
        dimension_semantics=("parallel", "parallel"),
        vmem_limit_bytes=vmem_limit,
    )
    out_shape = jax.ShapeDtypeStruct((B, S1, C), x.dtype)

    apply_dropout = bool(training) and float(dropout_p) > 0.0
    if apply_dropout:
        if seed is None:
            raise ValueError("seed is required when training with dropout_p > 0")
        seed_arr = jnp.asarray(seed, dtype=jnp.int32).reshape((1,))
        kernel = _make_train_kernel(float(dropout_p), S1, C, rb, ts)
        grid_spec = pltpu.PrefetchScalarGridSpec(
            num_scalar_prefetch=1,
            grid=(n_s, n_b),
            in_specs=[
                pl.BlockSpec((rb, ts, C), lambda si, bi, seed_ref: (bi, si, 0)),
                pl.BlockSpec((ts, C), lambda si, bi, seed_ref: (si, 0)),
            ],
            out_specs=pl.BlockSpec((rb, ts, C), lambda si, bi, seed_ref: (bi, si, 0)),
        )
        out3 = pl.pallas_call(
            kernel,
            out_shape=out_shape,
            grid_spec=grid_spec,
            compiler_params=compiler_params,
        )(seed_arr, x3, pe2)
    else:
        kernel = _make_eval_kernel()
        out3 = pl.pallas_call(
            kernel,
            out_shape=out_shape,
            grid=(n_s, n_b),
            in_specs=[
                pl.BlockSpec((rb, ts, C), lambda si, bi: (bi, si, 0)),
                pl.BlockSpec((ts, C), lambda si, bi: (si, 0)),
            ],
            out_specs=pl.BlockSpec((rb, ts, C), lambda si, bi: (bi, si, 0)),
            compiler_params=compiler_params,
        )(x3, pe2)

    return out3.reshape(B, S, D)


if __name__ == "__main__":
    # Small shapes consistent with the module: batch=2, seq=8, d_model=32.
    B, S, D = 2, 8, 32
    MAX_LEN = 100
    P_DROP = 0.1

    key = jax.random.PRNGKey(0)
    x = jax.random.normal(key, (B, S, D), dtype=jnp.float32)
    pe = build_pe_table(D, MAX_LEN)
    seed = jnp.array([0], dtype=jnp.int32)

    # Eval-mode forward (dropout is identity), matching model.eval() in torch.
    out = positional_encoding_forward(x, pe, dropout_p=P_DROP, training=False)
    out = jax.block_until_ready(out)

    ref = x + pe[None, :S, :]
    assert out.shape == (B, S, D)
    assert jnp.allclose(out, ref, atol=1e-6, rtol=1e-6)

    # Training-mode smoke test: kept elements equal ref / (1 - p), dropped
    # elements are exactly 0.
    out_tr = positional_encoding_forward(x, pe, seed, dropout_p=P_DROP, training=True)
    out_tr = jax.block_until_ready(out_tr)
    assert out_tr.shape == (B, S, D)
    kept = jnp.abs(out_tr) > 1e-6
    scaled_ref = ref / (1.0 - P_DROP)
    assert jnp.allclose(jnp.where(kept, out_tr, 0.0),
                        jnp.where(kept, scaled_ref, 0.0), atol=1e-5, rtol=1e-5)
    # TODO(synk): training-mode dropout uses a counter-based hash of
    # (seed, element index) rather than torch.nn.Dropout's RNG stream, so the
    # mask is a valid inverted dropout but not bitwise-identical to torch.

    print("KERNEL_OK")
</pallas_src>

<mosaic_0001>
module attributes {stable_mosaic.version = 11 : i64} {
  func.func @kernel(%arg0: i32, %arg1: i32, %arg2: memref<2x2x128xf32, #tpu.memory_space<vmem>>, %arg3: memref<2x128xf32, #tpu.memory_space<vmem>>, %arg4: memref<2x2x128xf32, #tpu.memory_space<vmem>>) attributes {dimension_semantics = [#tpu.dimension_semantics<parallel>, #tpu.dimension_semantics<parallel>], iteration_bounds = array<i64: 1, 1>, scalar_prefetch = 0 : i64, scratch_operands = 0 : i64, tpu.core_type = #tpu.core_type<tc>, window_params = [{transform_indices = @transform_0, window_bounds = array<i64: 2, 2, 128>}, {transform_indices = @transform_1, window_bounds = array<i64: 2, 128>}, {transform_indices = @transform_2, window_bounds = array<i64: 2, 2, 128>}]} {
    %c0 = arith.constant 0 : index
    %c0_0 = arith.constant 0 : index
    %c0_1 = arith.constant 0 : index
    %0 = vector.load %arg2[%c0, %c0_0, %c0_1] : memref<2x2x128xf32, #tpu.memory_space<vmem>>, vector<2x2x128xf32>
    %c0_2 = arith.constant 0 : index
    %c0_3 = arith.constant 0 : index
    %1 = vector.load %arg3[%c0_2, %c0_3] : memref<2x128xf32, #tpu.memory_space<vmem>>, vector<2x128xf32>
    %2 = vector.shape_cast %1 : vector<2x128xf32> to vector<1x2x128xf32>
    %3 = vector.broadcast %2 : vector<1x2x128xf32> to vector<2x2x128xf32>
    %4 = arith.addf %0, %3 : vector<2x2x128xf32>
    %c0_4 = arith.constant 0 : index
    %c0_5 = arith.constant 0 : index
    %c0_6 = arith.constant 0 : index
    %5 = vector.load %arg4[%c0_4, %c0_5, %c0_6] : memref<2x2x128xf32, #tpu.memory_space<vmem>>, vector<2x2x128xf32>
    tpu.vector_store %arg4[%c0_4, %c0_5, %c0_6], %4 {strides = array<i32>} : memref<2x2x128xf32, #tpu.memory_space<vmem>>, vector<2x2x128xf32>,
    return
  }
  func.func @transform_0(%arg0: i32, %arg1: i32) -> (i32, i32, i32) {
    %c0_i32 = arith.constant 0 : i32
    %c0_i32_0 = arith.constant 0 : i32
    return %arg1, %arg0, %c0_i32 : i32, i32, i32
  }
  func.func @transform_1(%arg0: i32, %arg1: i32) -> (i32, i32) {
    %c0_i32 = arith.constant 0 : i32
    %c0_i32_0 = arith.constant 0 : i32
    return %arg0, %c0_i32 : i32, i32
  }
  func.func @transform_2(%arg0: i32, %arg1: i32) -> (i32, i32, i32) {
    %c0_i32 = arith.constant 0 : i32
    %c0_i32_0 = arith.constant 0 : i32
    return %arg1, %arg0, %c0_i32 : i32, i32, i32
  }
}

</mosaic_0001>

<llo_original>
// kernel: positional_encoding_forward.1
$region0: #{positional_encoding_forward.1}
  #allocation0 [shape = 'u32[]', space=smem, size = 0x4, offset = 0x4, fixed_abs, tag = 'smem constant byte address 0x4 - core index']
  #allocation1 [shape = 'u32[144,128]{1,0:T(1,128)}', space=vmem, size = 0x12000, scoped, tag = 'internal scratch']
  %s0 = inlined_call_operand.vmem [shape: f32[2,2,128], index: 0, kind: input, shape index: {}]
  %s1 = inlined_call_operand.vmem [shape: f32[2,128], index: 1, kind: input, shape index: {}]
  %s2 = inlined_call_operand.vmem [shape: f32[2,2,128], index: 2, kind: output, shape index: {}]
  %s3 = sld [smem:[#allocation0]]
  $region18: #{positional_encoding_forward.1} parent=0
    _
  %s5 = ssub.s32 1, %s3
  %s6 = scalar_select 0, %s5, %s3
  // Predicated region
  $region2: #{positional_encoding_forward.1} parent=0 // pred_check
    _
  $region3: #{positional_encoding_forward.1} parent=0 // pred_check_branch
    %8 = sbr.rel (0) target = $region5
  $region4: #{positional_encoding_forward.1} parent=0 // pred_region
    _
  $region5: #{positional_encoding_forward.1} parent=0 // pred_fallthru
    _
  // Predicated region
  $region6: #{positional_encoding_forward.1} parent=0 // pred_check
    _
  $region7: #{positional_encoding_forward.1} parent=0 // pred_check_branch
    %10 = sbr.rel (0) target = $region9
  $region8: #{positional_encoding_forward.1} parent=0 // pred_region
    _
  $region9: #{positional_encoding_forward.1} parent=0 // pred_fallthru
    _
  %v11 = vld [vmem:[%s0] sm:$0x3]
  %v12 = vld [vmem:[%s0 + $0x2] sm:$0x3]
  %v13 = vld [vmem:[%s1] sm:$0x3]
  %v14 = vadd.f32 %v11, %v13
  %v15 = vadd.f32 %v12, %v13
  %16 = vst [vmem:[%s2] sm:$0x3] %v14
  %17 = vst [vmem:[%s2 + $0x2] sm:$0x3] %v15
  // Predicated region
  $region10: #{positional_encoding_forward.1} parent=0 // pred_check
    _
  $region11: #{positional_encoding_forward.1} parent=0 // pred_check_branch
    %19 = sbr.rel (0) target = $region13
  $region12: #{positional_encoding_forward.1} parent=0 // pred_region
    _
  $region13: #{positional_encoding_forward.1} parent=0 // pred_fallthru
    _
  // Predicated region
  $region14: #{positional_encoding_forward.1} parent=0 // pred_check
    _
  $region15: #{positional_encoding_forward.1} parent=0 // pred_check_branch
    %21 = sbr.rel (0) target = $region17
  $region16: #{positional_encoding_forward.1} parent=0 // pred_region
    _
  $region17: #{positional_encoding_forward.1} parent=0 // pred_fallthru
    _

</llo_original>
